<compile_context>
chip_gen: v6e
topology: v6e:2x2x1
jax: 0.10.0
libtpu: 0.0.40
codegen_flags: <defaults>
</compile_context>

<pallas_src>
import jax
import jax.numpy as jnp
from jax.experimental import pallas as pl
from jax.experimental.pallas import tpu as pltpu

_MiB = 1024 * 1024
_LANE = 128                      # lane width granularity
_MAX_LANE_MULT = 32              # cap slab width at 32 * 128 = 4096 lanes
_SMALL_FALLBACK_BYTES = 1 * _MiB


def _chip_config():
    """Returns (num_tensorcores, target_block_bytes, vmem_limit_bytes|None)."""
    kind = ""
    try:
        kind = jax.devices()[0].device_kind.lower()
    except Exception:
        pass
    if "v5 lite" in kind or "v5e" in kind or "v5lite" in kind:
        # ~820 GB/s HBM: 2 MiB blocks already hide the per-step overhead; keep
        # the default 16 MiB scoped VMEM (8 MiB double-buffered footprint).
        return 1, 2 * _MiB, None
    if "v6" in kind:
        # 1 TC, ~1.4 TB/s: 4 MiB blocks; 16 MiB footprint fits default 32 MiB.
        return 1, 4 * _MiB, None
    if "v7" in kind:
        # 2 TCs/chip, ~3.2 TB/s HBM, 64 MiB physical VMEM per TC: bigger blocks
        # keep the fixed step cost small; raise scoped-VMEM limit for 32 MiB.
        return 2, 8 * _MiB, 40 * _MiB
    # Unknown chip: conservative defaults.
    return 1, 4 * _MiB, 32 * _MiB


def _relu6_kernel(x_ref, o_ref):
    # weak-typed 0 / 6 keep the input dtype (no promotion for bf16 / int)
    o_ref[...] = jnp.clip(x_ref[...], 0, 6).astype(o_ref.dtype)


def _relu6_pallas(x: jax.Array, *, alias_input: bool = False) -> jax.Array:
    orig_shape = x.shape
    dtype = x.dtype
    n = x.size
    itemsize = jnp.dtype(dtype).itemsize
    num_cores, target_block_bytes, vmem_limit = _chip_config()

    x_flat = x.reshape(-1)
    n_work = n
    padded = False
    if n % _LANE != 0:
        # Last resort only (rare for activation tensors): pad to the next
        # multiple of 128 lanes; at most 127 extra elements.
        n_work = pl.cdiv(n, _LANE) * _LANE
        x_flat = jnp.pad(x_flat, (0, n_work - n))
        padded = True

    # Adaptive lane width: the largest multiple of 128 that divides n_work
    # (capped at 4096 lanes).  This eliminates the old pad/slice HBM round
    # trips for shapes that are not multiples of 1024 while every store stays
    # a full-width, unmasked vst.
    m = n_work // _LANE
    d = 1
    for cand in range(min(_MAX_LANE_MULT, m), 0, -1):
        if m % cand == 0:
            d = cand
            break
    lane_w = _LANE * d
    rows = n_work // lane_w
    x2d = x_flat.reshape(rows, lane_w)

    # dtype-aware sublane packing: f32 -> 8, bf16 -> 16, int8/fp8 -> 32
    subl = max(8, 32 // itemsize)
    bytes_per_row = lane_w * itemsize

    if rows <= subl:
        tile_rows = rows                                   # full-extent sublane dim
    else:
        target_rows = max(subl, (target_block_bytes // bytes_per_row) // subl * subl)
        tile_rows = max(subl, min(target_rows, (rows // subl) * subl))
        if num_cores > 1 and n_work * itemsize >= 4 * _MiB:
            # Load-balance across TensorCores: >= 4 * num_cores roughly equal
            # steps so the ragged tail costs at most one block of skew.
            balanced = max(subl, (rows // (4 * num_cores)) // subl * subl)
            tile_rows = min(tile_rows, balanced)

    grid = (pl.cdiv(rows, tile_rows),)                     # ragged last block OK

    compiler_kwargs = {}
    if vmem_limit is not None:
        compiler_kwargs["vmem_limit_bytes"] = vmem_limit
    call_kwargs = {}
    if alias_input:
        # Halves the HBM footprint at the call boundary; only beneficial if the
        # caller actually donates `x` (otherwise XLA inserts a defensive copy).
        call_kwargs["input_output_aliases"] = {0: 0}

    out2d = pl.pallas_call(
        _relu6_kernel,
        out_shape=jax.ShapeDtypeStruct((rows, lane_w), dtype),
        grid_spec=pltpu.PrefetchScalarGridSpec(
            num_scalar_prefetch=0,
            grid=grid,
            in_specs=[pl.BlockSpec((tile_rows, lane_w), lambda i: (i, 0))],
            out_specs=pl.BlockSpec((tile_rows, lane_w), lambda i: (i, 0)),
        ),
        compiler_params=pltpu.CompilerParams(
            # "parallel" lets Mosaic shard the row axis across TensorCores on
            # multi-core chips.
            # TODO(synk): if v7x profiling shows single-core execution, switch
            # this axis to pltpu.CORE_PARALLEL.
            dimension_semantics=("parallel",),
            **compiler_kwargs,
        ),
        cost_estimate=pl.CostEstimate(
            flops=2 * n_work, transcendentals=0,
            bytes_accessed=2 * n_work * itemsize,
        ),
        **call_kwargs,
    )(x2d)

    out_flat = out2d.reshape(-1)
    if padded:
        out_flat = out_flat[:n]
    return out_flat.reshape(orig_shape)


def relu6(x: jax.Array, *, force_pallas: bool = False,
          alias_input: bool = False) -> jax.Array:
    """Forward pass of WithAnno3: ReLU6 == clamp(x, 0, 6)."""
    nbytes = x.size * jnp.dtype(x.dtype).itemsize
    if not force_pallas and nbytes < _SMALL_FALLBACK_BYTES:
        # A standalone kernel on a tiny tensor is pure launch/copy overhead;
        # in a larger jit, prefer letting XLA fuse the clamp into its producer.
        return jnp.clip(x, 0, 6).astype(x.dtype)
    return _relu6_pallas(x, alias_input=alias_input)


def relu6_reference(x: jax.Array) -> jax.Array:
    return jnp.clip(x, 0, 6).astype(x.dtype)


if __name__ == "__main__":
    k1, k2, k3 = jax.random.split(jax.random.PRNGKey(0), 3)

    # NCHW input consistent with the module's usage: batch=2, C=4, H=W=16.
    x = jax.random.normal(k1, (2, 4, 16, 16), dtype=jnp.float32) * 4.0
    out = jax.block_until_ready(relu6(x, force_pallas=True))
    ref = relu6_reference(x)
    assert out.shape == x.shape and out.dtype == x.dtype
    assert jnp.allclose(out, ref), "mismatch vs reference ReLU6 (pallas path)"

    # Default path for tiny tensors (fused fallback) must also match.
    out_fb = jax.block_until_ready(relu6(x))
    assert jnp.allclose(out_fb, ref), "mismatch vs reference ReLU6 (fallback)"

    # Non-1024-divisible size (2*3*40*40 = 9600): now pad-free via the
    # adaptive lane width (W = 3200, 3 rows, zero extra HBM passes).
    y = jax.random.normal(k2, (2, 3, 40, 40), dtype=jnp.float32) * 4.0
    out_y = jax.block_until_ready(relu6(y, force_pallas=True))
    assert out_y.shape == y.shape and out_y.dtype == y.dtype
    assert jnp.allclose(out_y, relu6_reference(y)), "mismatch (adaptive-width path)"

    # bf16: exercises the dtype-aware sublane packing and weak-typed clamp.
    xb = (jax.random.normal(k3, (2, 4, 16, 16), dtype=jnp.float32) * 4.0
          ).astype(jnp.bfloat16)
    out_b = jax.block_until_ready(relu6(xb, force_pallas=True))
    assert out_b.dtype == jnp.bfloat16
    assert jnp.allclose(out_b.astype(jnp.float32),
                        relu6_reference(xb).astype(jnp.float32)), "mismatch (bf16)"

    # Awkward size not divisible by 128: exercises the last-resort tiny pad.
    z = jax.random.normal(k1, (3, 5, 7), dtype=jnp.float32) * 4.0
    out_z = jax.block_until_ready(relu6(z, force_pallas=True))
    assert out_z.shape == z.shape
    assert jnp.allclose(out_z, relu6_reference(z)), "mismatch (tiny-pad path)"

    print("KERNEL_OK")
</pallas_src>

<mosaic_0001>
module attributes {stable_mosaic.version = 11 : i64} {
  func.func @_relu6_kernel(%arg0: i32, %arg1: memref<1x2048xf32, #tpu.memory_space<vmem>>, %arg2: memref<1x2048xf32, #tpu.memory_space<vmem>>) attributes {dimension_semantics = [#tpu.dimension_semantics<parallel>], iteration_bounds = array<i64: 1>, scalar_prefetch = 0 : i64, scratch_operands = 0 : i64, tpu.core_type = #tpu.core_type<tc>, window_params = [{transform_indices = @transform_0, window_bounds = array<i64: 1, 2048>}, {transform_indices = @transform_1, window_bounds = array<i64: 1, 2048>}]} {
    %c0 = arith.constant 0 : index
    %c0_0 = arith.constant 0 : index
    %0 = vector.load %arg1[%c0, %c0_0] : memref<1x2048xf32, #tpu.memory_space<vmem>>, vector<1x2048xf32>
    %c0_i32 = arith.constant 0 : i32
    %c6_i32 = arith.constant 6 : i32
    %1 = arith.sitofp %c0_i32 : i32 to f32
    %2 = vector.broadcast %1 : f32 to vector<1x2048xf32>
    %3 = arith.maximumf %2, %0 : vector<1x2048xf32>
    %4 = arith.sitofp %c6_i32 : i32 to f32
    %5 = vector.broadcast %4 : f32 to vector<1x2048xf32>
    %6 = arith.minimumf %5, %3 : vector<1x2048xf32>
    %c0_1 = arith.constant 0 : index
    %c0_2 = arith.constant 0 : index
    %7 = vector.load %arg2[%c0_1, %c0_2] : memref<1x2048xf32, #tpu.memory_space<vmem>>, vector<1x2048xf32>
    tpu.vector_store %arg2[%c0_1, %c0_2], %6 {strides = array<i32>} : memref<1x2048xf32, #tpu.memory_space<vmem>>, vector<1x2048xf32>,
    return
  }
  func.func @transform_0(%arg0: i32) -> (i32, i32) {
    %c0_i32 = arith.constant 0 : i32
    %c0_i32_0 = arith.constant 0 : i32
    return %arg0, %c0_i32 : i32, i32
  }
  func.func @transform_1(%arg0: i32) -> (i32, i32) {
    %c0_i32 = arith.constant 0 : i32
    %c0_i32_0 = arith.constant 0 : i32
    return %arg0, %c0_i32 : i32, i32
  }
}

</mosaic_0001>

<llo_original>
// kernel: tpu_custom_call.1
$region0: #{tpu_custom_call.1}
  #allocation0 [shape = 'u32[]', space=smem, size = 0x4, offset = 0x4, fixed_abs, tag = 'smem constant byte address 0x4 - core index']
  #allocation1 [shape = 'u32[144,128]{1,0:T(1,128)}', space=vmem, size = 0x12000, scoped, tag = 'internal scratch']
  %s0 = inlined_call_operand.hbm [shape: f32[1,2048], index: 0, kind: input, shape index: {}]
  %s1 = inlined_call_operand.hbm [shape: f32[1,2048], index: 1, kind: output, shape index: {}]
  %s2 = sld [smem:[#allocation0]]
  $region18: #{tpu_custom_call.1} parent=0
    _
  %s4 = ssub.s32 1, %s2
  %s5 = scalar_select 0, %s4, %s2
  $region1: #{tpu_custom_call.1} parent=0
    #allocation2 [shape = 'u8[8192]{0}', space=vmem, size = 0x2000, scoped, tag = 'input window, operand 0, single buffered']
    #allocation3 [shape = 's32[1]{0}', space=sflag, size = 0x4, scoped, tag = 'scoped memory for tpu_custom_call.1']
    #allocation4 [shape = 's32[1]{0}', space=sflag, size = 0x4, scoped, tag = 'scoped memory for tpu_custom_call.1']
    #allocation5 [shape = 'u8[8192]{0}', space=vmem, size = 0x2000, scoped, tag = 'output window, operand 0, single buffered']
    %6 = vsyncpa [#allocation3], 0
    %7 = vsyncpa [#allocation4], 0
    // Predicated region
    $region2: #{tpu_custom_call.1} parent=1 // pred_check
      _
    $region3: #{tpu_custom_call.1} parent=1 // pred_check_branch
      %9 = sbr.rel (0) target = $region5
    $region4: #{tpu_custom_call.1} parent=1 // pred_region
      %s11 = ssub.s32 256, 256
      %12 = vsyncadd [#allocation3], %s11
      %s14 = sshll.u32 [#allocation2], 4
      %s15 = int_to_ptr.vmem [resolvable:$true] %s14
      %17 = dma.hbm_to_vmem [thread:$0]  %s0, 256, %s15, [#allocation3]
    $region5: #{tpu_custom_call.1} parent=1 // pred_fallthru
      _
    // Predicated region
    $region6: #{tpu_custom_call.1} parent=1 // pred_check
      _
    $region7: #{tpu_custom_call.1} parent=1 // pred_check_branch
      %19 = sbr.rel (0) target = $region9
    $region8: #{tpu_custom_call.1} parent=1 // pred_region
      %20 = dma.done [#allocation3], 256
    $region9: #{tpu_custom_call.1} parent=1 // pred_fallthru
      _
    %v21 = vld [vmem:[#allocation2] sm:$0xff]
    %v22 = vld [vmem:[#allocation2 + $0x8] sm:$0xff]
    %v23 = vmax.f32 %v21, 0.0
    %v24 = vmax.f32 %v22, 0.0
    %v25 = vmin.f32 %v23, 6.0
    %v26 = vmin.f32 %v24, 6.0
    %27 = vst [vmem:[#allocation5] sm:$0xff] %v25
    %28 = vst [vmem:[#allocation5 + $0x8] sm:$0xff] %v26
    // Predicated region
    $region10: #{tpu_custom_call.1} parent=1 // pred_check
      _
    $region11: #{tpu_custom_call.1} parent=1 // pred_check_branch
      %30 = sbr.rel (0) target = $region13
    $region12: #{tpu_custom_call.1} parent=1 // pred_region
      %s32 = ssub.s32 256, 256
      %33 = vsyncadd [#allocation4], %s32
      %s35 = sshll.u32 [#allocation5], 4
      %s36 = int_to_ptr.vmem [resolvable:$true] %s35
      %38 = dma.vmem_to_hbm [thread:$0]  %s36, 256, %s1, [#allocation4]
    $region13: #{tpu_custom_call.1} parent=1 // pred_fallthru
      _
    // Predicated region
    $region14: #{tpu_custom_call.1} parent=1 // pred_check
      _
    $region15: #{tpu_custom_call.1} parent=1 // pred_check_branch
      %40 = sbr.rel (0) target = $region17
    $region16: #{tpu_custom_call.1} parent=1 // pred_region
      %41 = dma.done [#allocation4], 256
    $region17: #{tpu_custom_call.1} parent=1 // pred_fallthru
      _
    %42 = vsyncpa [#allocation3], 1
    %43 = vsyncpa [#allocation4], 1

</llo_original>
